<compile_context>
chip_gen: v7x
topology: tpu7x:2x2x1
jax: 0.10.0
libtpu: 0.0.40
codegen_flags: <defaults>
</compile_context>

<pallas_src>
import jax
import jax.numpy as jnp
from jax.experimental import pallas as pl
from jax.experimental.pallas import tpu as pltpu


def _round_up(v, m):
    return (v + m - 1) // m * m


def _tpu_defaults():
    """Generation-aware knobs: MXU-matched rows-per-tile and VMEM cap."""
    rows_target = 256                      # v6e / v7x: 256-wide MXU
    vmem_limit = 64 * 1024 * 1024          # safe fallback on every generation
    try:
        info = pltpu.get_tpu_info()
        cap = int(getattr(info, "vmem_capacity_bytes", 128 * 1024 * 1024))
        # ~75% of physical: ~96 MiB on 128-MiB v5e/v6e, ~48 MiB on 64-MiB v7x.
        vmem_limit = max(32 * 1024 * 1024, min(cap * 3 // 4, 100 * 1024 * 1024))
        if "5" in str(getattr(info, "chip_version", "")).lower():
            rows_target = 128              # v5e: 4x128^2 MXUs, 128 rows already matched
    except Exception:
        pass
    return rows_target, vmem_limit


def tree_regressor_kernel(adj_ref, z_ref, p_ref,
                          b1_ref, w2_ref, b2_ref, w3_ref, b3_ref, w4_ref, b4_ref,
                          out_ref):
    # GIN sum aggregation over this tile's block-diagonal adjacency block.
    # Lin1 is pre-folded: z = x @ W1, so A @ z == (A @ x) @ W1.
    agg = jnp.dot(adj_ref[0], z_ref[...], preferred_element_type=jnp.float32)
    h = jnp.maximum(agg + b1_ref[...], 0.0)
    h = jnp.dot(h.astype(jnp.bfloat16), w2_ref[...],
                preferred_element_type=jnp.float32) + b2_ref[...]
    # scatter_mean: f32 pooling matrix already carries the exact 1/count per graph,
    # and h stays f32 here (no bf16 rounding of the pooled summands).
    pooled = jnp.dot(p_ref[...], h, preferred_element_type=jnp.float32)
    # Regressor MLP: Lin -> ReLU -> Lin; lane-dense (TG, 128) store.
    g = jnp.dot(pooled.astype(jnp.bfloat16), w3_ref[...],
                preferred_element_type=jnp.float32) + b3_ref[...]
    g = jnp.maximum(g, 0.0)
    out_ref[...] = jnp.dot(g.astype(jnp.bfloat16), w4_ref[...],
                           preferred_element_type=jnp.float32) + b4_ref[...]


def prepare_params(params):
    """Pad weights/biases to lane width 128 once (weights -> bf16 MXU operands).

    W1 is returned unpadded in f32: it is folded into the wrapper (z = x @ W1),
    so the kernel never streams it."""
    def pad_w(w):
        r, c = _round_up(w.shape[0], 128), _round_up(w.shape[1], 128)
        return (jnp.zeros((r, c), jnp.float32)
                .at[:w.shape[0], :w.shape[1]].set(w).astype(jnp.bfloat16))

    def pad_b(b):
        c = _round_up(b.shape[1], 128)
        return jnp.zeros((1, c), jnp.float32).at[:, :b.shape[1]].set(b)

    w1, b1, w2, b2, w3, b3, w4, b4 = params
    return (w1, pad_b(b1), pad_w(w2), pad_b(b2),
            pad_w(w3), pad_b(b3), pad_w(w4), pad_b(b4))


def tree_regressor_forward(x, edge_index, x_batch, prepared, num_graphs,
                           max_nodes_per_graph, out_dim):
    """Block-diagonal layout construction + fully parallel tiled Pallas forward.

    Assumes the PyG Batch convention: x_batch is sorted (nodes grouped by graph)
    and edges never cross graphs (true for batched trees)."""
    w1, b1, w2, b2, w3, b3, w4, b4 = prepared
    n, _ = x.shape
    hid = w1.shape[1]
    h_pad = w2.shape[0]
    o_pad = w4.shape[1]

    rows_target, vmem_limit = _tpu_defaults()

    # Per-graph padded node slot count (multiple of 16 keeps bf16 sublanes dense).
    np_ = _round_up(max(max_nodes_per_graph, 1), 16)
    # Graphs per tile / rows per tile (~256 rows on v6e/v7x, 128 on v5e).
    tg = max(8, _round_up(max(rows_target // np_, 1), 8))
    tm = tg * np_
    num_tiles = (max(num_graphs, 1) + tg - 1) // tg
    g_pad = num_tiles * tg
    n_rows = num_tiles * tm
    # TODO(synk): a single graph bigger than ~rows_target nodes needs K-tiling of its
    #             adjacency block (or the sparse edge-list segment-sum path).

    # Node -> (graph, local slot) mapping (x_batch sorted / grouped by graph).
    counts = jnp.zeros((num_graphs,), jnp.int32).at[x_batch].add(1)
    starts = jnp.concatenate([jnp.zeros((1,), jnp.int32),
                              jnp.cumsum(counts)[:-1].astype(jnp.int32)])
    local = jnp.arange(n, dtype=jnp.int32) - starts[x_batch]
    row_in_tile = (x_batch % tg) * np_ + local
    tile_of = x_batch // tg

    # Fold conv Lin1: z = x @ W1 in f32, pad to lane width, lay out tile-major.
    z = jnp.zeros((n, h_pad), jnp.float32).at[:, :hid].set(x @ w1)
    z_rows = (jnp.zeros((n_rows, h_pad), jnp.float32)
              .at[x_batch * np_ + local].set(z).astype(jnp.bfloat16))

    # Block-diagonal adjacency: only the (tm, tm) diagonal blocks exist (no O(N^2)
    # dense intermediate).  Entry counts <= 2 for trees, exact in bf16; keep counts
    # <= 256 if this is ever reused for dense multigraphs.
    src, dst = edge_index[0], edge_index[1]
    adj = jnp.zeros((num_tiles, tm, tm), jnp.float32)
    adj = adj.at[tile_of[dst], row_in_tile[dst], row_in_tile[src]].add(1.0)
    adj = adj.at[tile_of, row_in_tile, row_in_tile].add(1.0)     # self loops (real nodes)
    adj = adj.astype(jnp.bfloat16)

    # Pooling matrix with exact f32 1/count baked in (scatter_mean, no approx recip).
    inv_cnt = 1.0 / jnp.maximum(counts.astype(jnp.float32), 1.0)
    pool = (jnp.zeros((g_pad, tm), jnp.float32)
            .at[x_batch, row_in_tile].set(inv_cnt[x_batch]))

    def _res(shape):
        # Constant-index resident operands: single-buffer them (the index never
        # changes, so the default second pipeline buffer is pure VMEM waste).
        try:
            return pl.BlockSpec(shape, lambda i: (0, 0),
                                pipeline_mode=pl.Buffered(1))
        except (TypeError, AttributeError):   # older jax: no pipeline_mode kwarg
            return pl.BlockSpec(shape, lambda i: (0, 0))

    out = pl.pallas_call(
        tree_regressor_kernel,
        out_shape=jax.ShapeDtypeStruct((g_pad, o_pad), jnp.float32),
        grid_spec=pltpu.PrefetchScalarGridSpec(
            num_scalar_prefetch=0,
            grid=(num_tiles,),
            in_specs=[
                pl.BlockSpec((1, tm, tm), lambda i: (i, 0, 0)),   # diag adjacency block
                pl.BlockSpec((tm, h_pad), lambda i: (i, 0)),      # z = x @ W1 rows
                pl.BlockSpec((tg, tm), lambda i: (i, 0)),         # pooling (mean) matrix
                _res((1, h_pad)),                                  # conv b1
                _res((h_pad, h_pad)), _res((1, h_pad)),            # conv Lin2
                _res((h_pad, h_pad)), _res((1, h_pad)),            # regressor Lin1
                _res((h_pad, o_pad)), _res((1, o_pad)),            # regressor Lin2
            ],
            out_specs=pl.BlockSpec((tg, o_pad), lambda i: (i, 0)),
        ),
        compiler_params=pltpu.CompilerParams(
            # Every grid step handles an independent tile of graphs end-to-end, so the
            # axis is truly parallel -> v7x's two TensorCores split the tiles.
            dimension_semantics=("parallel",),
            vmem_limit_bytes=vmem_limit,
        ),
    )(adj, z_rows, pool, b1, w2, b2, w3, b3, w4, b4)
    return out[:num_graphs, :out_dim]


def reference_forward(x, edge_index, x_batch, params, num_graphs, mimic_bf16=False):
    """Pure-JAX reference mirroring the PyTorch semantics.  With mimic_bf16=True the
    matmul operands are rounded to bf16 in the same order as the kernel."""
    c = ((lambda a: a.astype(jnp.bfloat16).astype(jnp.float32))
         if mimic_bf16 else (lambda a: a))
    w1, b1, w2, b2, w3, b3, w4, b4 = params
    src, dst = edge_index[0], edge_index[1]
    if mimic_bf16:
        # Kernel order: Lin1 folded first (z = x @ W1), then aggregation A @ z.
        z = c(x @ w1)
        agg = jnp.zeros_like(z).at[dst].add(z[src]) + z
        h = jnp.maximum(agg + b1, 0.0)
    else:
        agg = jnp.zeros_like(x).at[dst].add(x[src]) + x
        h = jnp.maximum(agg @ w1 + b1, 0.0)
    h = c(h) @ c(w2) + b2
    sums = jnp.zeros((num_graphs, h.shape[1]), jnp.float32).at[x_batch].add(h)
    cnts = jnp.zeros((num_graphs,), jnp.float32).at[x_batch].add(1.0)
    pooled = sums / jnp.maximum(cnts, 1.0)[:, None]
    g = jnp.maximum(c(pooled) @ c(w3) + b3, 0.0)
    return c(g) @ c(w4) + b4


if __name__ == "__main__":
    node_dim, hid_dim, out_dim = 8, 32, 4
    nodes_per_tree, num_graphs = 8, 2
    n = nodes_per_tree * num_graphs   # 16 nodes total

    key = jax.random.PRNGKey(0)
    ks = jax.random.split(key, 9)
    x = jax.random.normal(ks[0], (n, node_dim), jnp.float32)

    # Two binary trees (8 nodes each): edges child -> parent within each tree.
    src_list, dst_list = [], []
    for g in range(num_graphs):
        base = g * nodes_per_tree
        for child in range(1, nodes_per_tree):
            src_list.append(base + child)
            dst_list.append(base + (child - 1) // 2)
    edge_index = jnp.array([src_list, dst_list], dtype=jnp.int32)   # (2, 14)
    x_batch = jnp.repeat(jnp.arange(num_graphs, dtype=jnp.int32), nodes_per_tree)

    def init(k, shape):
        return 0.1 * jax.random.normal(k, shape, jnp.float32)

    # Weights stored as (in, out) (transposed vs torch Linear); biases as (1, out).
    params = (
        init(ks[1], (node_dim, hid_dim)), init(ks[2], (1, hid_dim)),   # conv Lin1
        init(ks[3], (hid_dim, hid_dim)),  init(ks[4], (1, hid_dim)),   # conv Lin2
        init(ks[5], (hid_dim, hid_dim)),  init(ks[6], (1, hid_dim)),   # regressor Lin1
        init(ks[7], (hid_dim, out_dim)),  init(ks[8], (1, out_dim)),   # regressor Lin2
    )

    # TODO(synk): global_feat concat (dim=0) and node_level=True branch not exercised
    # (module defaults global_feat=None, node_level=False, n_layer=1).

    prepared = prepare_params(params)   # pad + bf16-cast once, outside the call
    fwd = jax.jit(tree_regressor_forward, static_argnums=(4, 5, 6))
    out = fwd(x, edge_index, x_batch, prepared, num_graphs, nodes_per_tree, out_dim)
    out = jax.block_until_ready(out)

    assert out.shape == (num_graphs, out_dim)
    ref_bf16 = reference_forward(x, edge_index, x_batch, params, num_graphs,
                                 mimic_bf16=True)
    ref_f32 = reference_forward(x, edge_index, x_batch, params, num_graphs)
    assert jnp.allclose(out, ref_bf16, atol=1e-2, rtol=1e-2), (out, ref_bf16)
    assert jnp.allclose(out, ref_f32, atol=5e-2, rtol=5e-2), (out, ref_f32)
    print("KERNEL_OK")
</pallas_src>

<mosaic_0001>
module attributes {stable_mosaic.version = 11 : i64} {
  func.func private @main(%arg0: i32) attributes {dimension_semantics = [#tpu.dimension_semantics<core_parallel>], iteration_bounds = array<i64: 2>, tpu.core_type = #tpu.core_type<sc_scalar_subcore>, window_params = []} {
    return
  }
}

module attributes {stable_mosaic.version = 11 : i64} {
  func.func private @main(%arg0: i32) attributes {dimension_semantics = [#tpu.dimension_semantics<core_parallel>], iteration_bounds = array<i64: 2>, tpu.core_type = #tpu.core_type<sc_scalar_subcore>, window_params = []} {
    return
  }
}

module attributes {stable_mosaic.version = 11 : i64} {
  func.func @tree_regressor_kernel(%arg0: i32, %arg1: memref<1x256x256xbf16, #tpu.memory_space<vmem>>, %arg2: memref<256x128xbf16, #tpu.memory_space<vmem>>, %arg3: memref<16x256xf32, #tpu.memory_space<vmem>>, %arg4: memref<1x128xf32, #tpu.memory_space<vmem>>, %arg5: memref<128x128xbf16, #tpu.memory_space<vmem>>, %arg6: memref<1x128xf32, #tpu.memory_space<vmem>>, %arg7: memref<128x128xbf16, #tpu.memory_space<vmem>>, %arg8: memref<1x128xf32, #tpu.memory_space<vmem>>, %arg9: memref<128x128xbf16, #tpu.memory_space<vmem>>, %arg10: memref<1x128xf32, #tpu.memory_space<vmem>>, %arg11: memref<16x128xf32, #tpu.memory_space<vmem>>) attributes {dimension_semantics = [#tpu.dimension_semantics<parallel>], iteration_bounds = array<i64: 1>, scalar_prefetch = 0 : i64, scratch_operands = 0 : i64, tpu.core_type = #tpu.core_type<tc>, window_params = [{transform_indices = @transform_0, window_bounds = array<i64: 1, 256, 256>}, {transform_indices = @transform_1, window_bounds = array<i64: 256, 128>}, {transform_indices = @transform_2, window_bounds = array<i64: 16, 256>}, {pipeline_mode = #tpu.pipeline_mode<synchronous>, transform_indices = @transform_3, window_bounds = array<i64: 1, 128>}, {pipeline_mode = #tpu.pipeline_mode<synchronous>, transform_indices = @transform_4, window_bounds = array<i64: 128, 128>}, {pipeline_mode = #tpu.pipeline_mode<synchronous>, transform_indices = @transform_5, window_bounds = array<i64: 1, 128>}, {pipeline_mode = #tpu.pipeline_mode<synchronous>, transform_indices = @transform_6, window_bounds = array<i64: 128, 128>}, {pipeline_mode = #tpu.pipeline_mode<synchronous>, transform_indices = @transform_7, window_bounds = array<i64: 1, 128>}, {pipeline_mode = #tpu.pipeline_mode<synchronous>, transform_indices = @transform_8, window_bounds = array<i64: 128, 128>}, {pipeline_mode = #tpu.pipeline_mode<synchronous>, transform_indices = @transform_9, window_bounds = array<i64: 1, 128>}, {transform_indices = @transform_10, window_bounds = array<i64: 16, 128>}]} {
    %c0 = arith.constant 0 : index
    %c0_0 = arith.constant 0 : index
    %c0_1 = arith.constant 0 : index
    %0 = vector.load %arg1[%c0, %c0_0, %c0_1] : memref<1x256x256xbf16, #tpu.memory_space<vmem>>, vector<1x256x256xbf16>
    %1 = vector.shape_cast %0 : vector<1x256x256xbf16> to vector<256x256xbf16>
    %c0_2 = arith.constant 0 : index
    %c0_3 = arith.constant 0 : index
    %2 = vector.load %arg2[%c0_2, %c0_3] : memref<256x128xbf16, #tpu.memory_space<vmem>>, vector<256x128xbf16>
    %cst = arith.constant dense<0.000000e+00> : vector<256x128xf32>
    %3 = tpu.matmul %1, %2, %cst {dimension_numbers = #tpu.dot_dimension_numbers<[1], [0], [0], [1], [0, 0, 1, 1], [], []>} : vector<256x256xbf16>, vector<256x128xbf16>, vector<256x128xf32> -> vector<256x128xf32>
    %c0_4 = arith.constant 0 : index
    %c0_5 = arith.constant 0 : index
    %4 = vector.load %arg4[%c0_4, %c0_5] : memref<1x128xf32, #tpu.memory_space<vmem>>, vector<1x128xf32>
    %5 = vector.broadcast %4 : vector<1x128xf32> to vector<256x128xf32>
    %6 = arith.addf %3, %5 : vector<256x128xf32>
    %cst_6 = arith.constant 0.000000e+00 : f32
    %7 = vector.broadcast %cst_6 : f32 to vector<256x128xf32>
    %8 = arith.maximumf %6, %7 : vector<256x128xf32>
    %9 = arith.truncf %8 : vector<256x128xf32> to vector<256x128xbf16>
    %c0_7 = arith.constant 0 : index
    %c0_8 = arith.constant 0 : index
    %10 = vector.load %arg5[%c0_7, %c0_8] : memref<128x128xbf16, #tpu.memory_space<vmem>>, vector<128x128xbf16>
    %cst_9 = arith.constant dense<0.000000e+00> : vector<256x128xf32>
    %11 = tpu.matmul %9, %10, %cst_9 {dimension_numbers = #tpu.dot_dimension_numbers<[1], [0], [0], [1], [0, 0, 1, 1], [], []>} : vector<256x128xbf16>, vector<128x128xbf16>, vector<256x128xf32> -> vector<256x128xf32>
    %c0_10 = arith.constant 0 : index
    %c0_11 = arith.constant 0 : index
    %12 = vector.load %arg6[%c0_10, %c0_11] : memref<1x128xf32, #tpu.memory_space<vmem>>, vector<1x128xf32>
    %13 = vector.broadcast %12 : vector<1x128xf32> to vector<256x128xf32>
    %14 = arith.addf %11, %13 : vector<256x128xf32>
    %c0_12 = arith.constant 0 : index
    %c0_13 = arith.constant 0 : index
    %15 = vector.load %arg3[%c0_12, %c0_13] : memref<16x256xf32, #tpu.memory_space<vmem>>, vector<16x256xf32>
    %cst_14 = arith.constant dense<0.000000e+00> : vector<16x128xf32>
    %16 = tpu.matmul %15, %14, %cst_14 {dimension_numbers = #tpu.dot_dimension_numbers<[1], [0], [0], [1], [0, 0, 1, 1], [], []>} : vector<16x256xf32>, vector<256x128xf32>, vector<16x128xf32> -> vector<16x128xf32>
    %17 = arith.truncf %16 : vector<16x128xf32> to vector<16x128xbf16>
    %c0_15 = arith.constant 0 : index
    %c0_16 = arith.constant 0 : index
    %18 = vector.load %arg7[%c0_15, %c0_16] : memref<128x128xbf16, #tpu.memory_space<vmem>>, vector<128x128xbf16>
    %cst_17 = arith.constant dense<0.000000e+00> : vector<16x128xf32>
    %19 = tpu.matmul %17, %18, %cst_17 {dimension_numbers = #tpu.dot_dimension_numbers<[1], [0], [0], [1], [0, 0, 1, 1], [], []>} : vector<16x128xbf16>, vector<128x128xbf16>, vector<16x128xf32> -> vector<16x128xf32>
    %c0_18 = arith.constant 0 : index
    %c0_19 = arith.constant 0 : index
    %20 = vector.load %arg8[%c0_18, %c0_19] : memref<1x128xf32, #tpu.memory_space<vmem>>, vector<1x128xf32>
    %21 = vector.broadcast %20 : vector<1x128xf32> to vector<16x128xf32>
    %22 = arith.addf %19, %21 : vector<16x128xf32>
    %cst_20 = arith.constant 0.000000e+00 : f32
    %23 = vector.broadcast %cst_20 : f32 to vector<16x128xf32>
    %24 = arith.maximumf %22, %23 : vector<16x128xf32>
    %25 = arith.truncf %24 : vector<16x128xf32> to vector<16x128xbf16>
    %c0_21 = arith.constant 0 : index
    %c0_22 = arith.constant 0 : index
    %26 = vector.load %arg9[%c0_21, %c0_22] : memref<128x128xbf16, #tpu.memory_space<vmem>>, vector<128x128xbf16>
    %cst_23 = arith.constant dense<0.000000e+00> : vector<16x128xf32>
    %27 = tpu.matmul %25, %26, %cst_23 {dimension_numbers = #tpu.dot_dimension_numbers<[1], [0], [0], [1], [0, 0, 1, 1], [], []>} : vector<16x128xbf16>, vector<128x128xbf16>, vector<16x128xf32> -> vector<16x128xf32>
    %c0_24 = arith.constant 0 : index
    %c0_25 = arith.constant 0 : index
    %28 = vector.load %arg10[%c0_24, %c0_25] : memref<1x128xf32, #tpu.memory_space<vmem>>, vector<1x128xf32>
    %29 = vector.broadcast %28 : vector<1x128xf32> to vector<16x128xf32>
    %30 = arith.addf %27, %29 : vector<16x128xf32>
    %c0_26 = arith.constant 0 : index
    %c0_27 = arith.constant 0 : index
    %31 = vector.load %arg11[%c0_26, %c0_27] : memref<16x128xf32, #tpu.memory_space<vmem>>, vector<16x128xf32>
    tpu.vector_store %arg11[%c0_26, %c0_27], %30 {strides = array<i32>} : memref<16x128xf32, #tpu.memory_space<vmem>>, vector<16x128xf32>,
    return
  }
  func.func @transform_0(%arg0: i32) -> (i32, i32, i32) {
    %c0_i32 = arith.constant 0 : i32
    %c0_i32_0 = arith.constant 0 : i32
    %c0_i32_1 = arith.constant 0 : i32
    return %arg0, %c0_i32, %c0_i32_0 : i32, i32, i32
  }
  func.func @transform_1(%arg0: i32) -> (i32, i32) {
    %c0_i32 = arith.constant 0 : i32
    %c0_i32_0 = arith.constant 0 : i32
    return %arg0, %c0_i32 : i32, i32
  }
  func.func @transform_2(%arg0: i32) -> (i32, i32) {
    %c0_i32 = arith.constant 0 : i32
    %c0_i32_0 = arith.constant 0 : i32
    return %arg0, %c0_i32 : i32, i32
  }
  func.func @transform_3(%arg0: i32) -> (i32, i32) {
    %c0_i32 = arith.constant 0 : i32
    %c0_i32_0 = arith.constant 0 : i32
    %c0_i32_1 = arith.constant 0 : i32
    return %c0_i32, %c0_i32_0 : i32, i32
  }
  func.func @transform_4(%arg0: i32) -> (i32, i32) {
    %c0_i32 = arith.constant 0 : i32
    %c0_i32_0 = arith.constant 0 : i32
    %c0_i32_1 = arith.constant 0 : i32
    return %c0_i32, %c0_i32_0 : i32, i32
  }
  func.func @transform_5(%arg0: i32) -> (i32, i32) {
    %c0_i32 = arith.constant 0 : i32
    %c0_i32_0 = arith.constant 0 : i32
    %c0_i32_1 = arith.constant 0 : i32
    return %c0_i32, %c0_i32_0 : i32, i32
  }
  func.func @transform_6(%arg0: i32) -> (i32, i32) {
    %c0_i32 = arith.constant 0 : i32
    %c0_i32_0 = arith.constant 0 : i32
    %c0_i32_1 = arith.constant 0 : i32
    return %c0_i32, %c0_i32_0 : i32, i32
  }
  func.func @transform_7(%arg0: i32) -> (i32, i32) {
    %c0_i32 = arith.constant 0 : i32
    %c0_i32_0 = arith.constant 0 : i32
    %c0_i32_1 = arith.constant 0 : i32
    return %c0_i32, %c0_i32_0 : i32, i32
  }
  func.func @transform_8(%arg0: i32) -> (i32, i32) {
    %c0_i32 = arith.constant 0 : i32
    %c0_i32_0 = arith.constant 0 : i32
    %c0_i32_1 = arith.constant 0 : i32
    return %c0_i32, %c0_i32_0 : i32, i32
  }
  func.func @transform_9(%arg0: i32) -> (i32, i32) {
    %c0_i32 = arith.constant 0 : i32
    %c0_i32_0 = arith.constant 0 : i32
    %c0_i32_1 = arith.constant 0 : i32
    return %c0_i32, %c0_i32_0 : i32, i32
  }
  func.func @transform_10(%arg0: i32) -> (i32, i32) {
    %c0_i32 = arith.constant 0 : i32
    %c0_i32_0 = arith.constant 0 : i32
    return %arg0, %c0_i32 : i32, i32
  }
}

</mosaic_0001>

<llo_original>
// kernel: ne.0
$region0: #{ne.0}
  #allocation2 [shape = 's32[1]{0}', space=sflag, size = 0x4, scoped, tag = 'scoped memory for ne.0']
  %s0 = inlined_call_operand.<no memory space> [shape: s32[], index: 0, kind: input, shape index: {}]
  %s1 = inlined_call_operand.hbm [shape: s32[16], index: 1, kind: output, shape index: {}]
  %v2 = vstv %s0
  $region1: #{ne.0} parent=0
    #allocation0 [shape = 'u8[512]{0}', space=vmem, size = 0x400, scoped, tag = 'operand span for operand 1']
    #allocation1 [shape = 's32[1]{0}', space=sflag, size = 0x4, scoped, tag = 'scoped memory for ne.0']
    %3 = vsyncpa [#allocation1], 0
    %4 = vst [vmem:[#allocation0] sm:$0x1] %v2
    %s6 = ssub.s32 16, 16
    %7 = vsyncadd [#allocation1], %s6
    %s9 = sshll.u32 [#allocation0], 4
    %s10 = int_to_ptr.vmem [resolvable:$true] %s9
    %12 = dma.vmem_to_hbm [thread:$0]  %s10, 16, %s1, [#allocation1]
    %13 = dma.done [#allocation1], 16
    %14 = vsyncpa [#allocation1], 1

// kernel: tree_regressor_forward.1
$region0: #{tree_regressor_forward.1}
  #allocation0 [shape = 'u32[]', space=smem, size = 0x4, offset = 0x4, fixed_abs, tag = 'smem constant byte address 0x4 - core index']
  #allocation1 [shape = 'u32[144,128]{1,0:T(1,128)}', space=vmem, size = 0x12000, scoped, tag = 'internal scratch']
  %s0 = inlined_call_operand.hbm [shape: bf16[1,256,256], index: 0, kind: input, shape index: {}]
  %s1 = inlined_call_operand.hbm [shape: bf16[256,128], index: 1, kind: input, shape index: {}]
  %s2 = inlined_call_operand.hbm [shape: f32[16,256], index: 2, kind: input, shape index: {}]
  %s3 = inlined_call_operand.hbm [shape: f32[1,128], index: 3, kind: input, shape index: {}]
  %s4 = inlined_call_operand.hbm [shape: bf16[128,128], index: 4, kind: input, shape index: {}]
  %s5 = inlined_call_operand.hbm [shape: f32[1,128], index: 5, kind: input, shape index: {}]
  %s6 = inlined_call_operand.hbm [shape: bf16[128,128], index: 6, kind: input, shape index: {}]
  %s7 = inlined_call_operand.hbm [shape: f32[1,128], index: 7, kind: input, shape index: {}]
  %s8 = inlined_call_operand.hbm [shape: bf16[128,128], index: 8, kind: input, shape index: {}]
  %s9 = inlined_call_operand.hbm [shape: f32[1,128], index: 9, kind: input, shape index: {}]
  %s10 = inlined_call_operand.hbm [shape: f32[16,128], index: 10, kind: output, shape index: {}]
  %s11 = sld [smem:[#allocation0]]
  $region90: #{tree_regressor_forward.1} parent=0
    _
  %s13 = ssub.s32 1, %s11
  %s14 = scalar_select 0, %s13, %s11
  $region1: #{tree_regressor_forward.1} parent=0
    #allocation2 [shape = 'u8[131072]{0}', space=vmem, size = 0x20000, scoped, tag = 'input window, operand 0, single buffered']
    #allocation3 [shape = 's32[1]{0}', space=sflag, size = 0x4, scoped, tag = 'scoped memory for tree_regressor_forward.1']
    #allocation4 [shape = 's32[1]{0}', space=sflag, size = 0x4, scoped, tag = 'scoped memory for tree_regressor_forward.1']
    #allocation5 [shape = 'u8[65536]{0}', space=vmem, size = 0x10000, scoped, tag = 'input window, operand 1, single buffered']
    #allocation6 [shape = 's32[1]{0}', space=sflag, size = 0x4, scoped, tag = 'scoped memory for tree_regressor_forward.1']
    #allocation7 [shape = 'u8[16384]{0}', space=vmem, size = 0x4000, scoped, tag = 'input window, operand 2, single buffered']
    #allocation8 [shape = 'u8[512]{0}', space=vmem, size = 0x400, scoped, tag = 'input window, operand 3, single buffered']
    #allocation9 [shape = 's32[1]{0}', space=sflag, size = 0x4, scoped, tag = 'scoped memory for tree_regressor_forward.1']
    #allocation10 [shape = 'u8[32768]{0}', space=vmem, size = 0x8000, scoped, tag = 'input window, operand 4, single buffered']
    #allocation11 [shape = 'u8[512]{0}', space=vmem, size = 0x400, scoped, tag = 'input window, operand 5, single buffered']
    #allocation12 [shape = 's32[1]{0}', space=sflag, size = 0x4, scoped, tag = 'scoped memory for tree_regressor_forward.1']
    #allocation13 [shape = 'u8[32768]{0}', space=vmem, size = 0x8000, scoped, tag = 'input window, operand 6, single buffered']
    #allocation14 [shape = 'u8[512]{0}', space=vmem, size = 0x400, scoped, tag = 'input window, operand 7, single buffered']
    #allocation15 [shape = 's32[1]{0}', space=sflag, size = 0x4, scoped, tag = 'scoped memory for tree_regressor_forward.1']
    #allocation16 [shape = 'u8[32768]{0}', space=vmem, size = 0x8000, scoped, tag = 'input window, operand 8, single buffered']
    #allocation17 [shape = 'u8[512]{0}', space=vmem, size = 0x400, scoped, tag = 'input window, operand 9, single buffered']
    #allocation18 [shape = 's32[1]{0}', space=sflag, size = 0x4, scoped, tag = 'scoped memory for tree_regressor_forward.1']
    #allocation19 [shape = 'u8[8192]{0}', space=vmem, size = 0x2000, scoped, tag = 'output window, operand 0, single buffered']
    %15 = vsyncpa [#allocation3], 0
    %16 = vsyncpa [#allocation6], 0
    %17 = vsyncpa [#allocation9], 0
    %18 = vsyncpa [#allocation12], 0
    %19 = vsyncpa [#allocation15], 0
    %20 = vsyncpa [#allocation18], 0
    %21 = vsyncpa [#allocation4], 0
    // Predicated region
    $region2: #{tree_regressor_forward.1} parent=1 // pred_check
      _
    $region3: #{tree_regressor_forward.1} parent=1 // pred_check_branch
      %23 = sbr.rel (0) target = $region5
    $region4: #{tree_regressor_forward.1} parent=1 // pred_region
      %s25 = ssub.s32 4096, 4096
      %26 = vsyncadd [#allocation3], %s25
      %s27 = sshll.u32 [#allocation2], 4
      %s28 = int_to_ptr.vmem [resolvable:$true] %s27
      %33 = dma.hbm_to_vmem [thread:$0]  %s0, 4096, %s28, [#allocation3], 128, 128, 8
    $region5: #{tree_regressor_forward.1} parent=1 // pred_fallthru
      _
    // Predicated region
    $region6: #{tree_regressor_forward.1} parent=1 // pred_check
      _
    $region7: #{tree_regressor_forward.1} parent=1 // pred_check_branch
      %35 = sbr.rel (0) target = $region9
    $region8: #{tree_regressor_forward.1} parent=1 // pred_region
      %s37 = ssub.s32 2048, 2048
      %38 = vsyncadd [#allocation6], %s37
      %s39 = sshll.u32 [#allocation5], 4
      %s40 = int_to_ptr.vmem [resolvable:$true] %s39
      %45 = dma.hbm_to_vmem [thread:$0]  %s1, 2048, %s40, [#allocation6], 64, 64, 4
    $region9: #{tree_regressor_forward.1} parent=1 // pred_fallthru
      _
    // Predicated region
    $region10: #{tree_regressor_forward.1} parent=1 // pred_check
      _
    $region11: #{tree_regressor_forward.1} parent=1 // pred_check_branch
      %47 = sbr.rel (0) target = $region13
    $region12: #{tree_regressor_forward.1} parent=1 // pred_region
      %s49 = ssub.s32 512, 512
      %50 = vsyncadd [#allocation6], %s49
      %s51 = sshll.u32 [#allocation7], 4
      %s52 = int_to_ptr.vmem [resolvable:$true] %s51
      %57 = dma.hbm_to_vmem [thread:$0]  %s2, 512, %s52, [#allocation6], 256, 256, 16
    $region13: #{tree_regressor_forward.1} parent=1 // pred_fallthru
      _
    // Predicated region
    $region14: #{tree_regressor_forward.1} parent=1 // pred_check
      _
    $region15: #{tree_regressor_forward.1} parent=1 // pred_check_branch
      %59 = sbr.rel (0) target = $region17
    $region16: #{tree_regressor_forward.1} parent=1 // pred_region
      %s61 = ssub.s32 16, 16
      %62 = vsyncadd [#allocation9], %s61
      %s64 = sshll.u32 [#allocation8], 4
      %s65 = int_to_ptr.vmem [resolvable:$true] %s64
      %67 = dma.hbm_to_vmem [thread:$0]  %s3, 16, %s65, [#allocation9]
    $region17: #{tree_regressor_forward.1} parent=1 // pred_fallthru
      _
    // Predicated region
    $region18: #{tree_regressor_forward.1} parent=1 // pred_check
      _
    $region19: #{tree_regressor_forward.1} parent=1 // pred_check_branch
      %69 = sbr.rel (0) target = $region21
    $region20: #{tree_regressor_forward.1} parent=1 // pred_region
      %s71 = ssub.s32 1024, 1024
      %72 = vsyncadd [#allocation9], %s71
      %s73 = sshll.u32 [#allocation10], 4
      %s74 = int_to_ptr.vmem [resolvable:$true] %s73
      %79 = dma.hbm_to_vmem [thread:$0]  %s4, 1024, %s74, [#allocation9], 64, 64, 4
    $region21: #{tree_regressor_forward.1} parent=1 // pred_fallthru
      _
    // Predicated region
    $region22: #{tree_regressor_forward.1} parent=1 // pred_check
      _
    $region23: #{tree_regressor_forward.1} parent=1 // pred_check_branch
      %81 = sbr.rel (0) target = $region25
    $region24: #{tree_regressor_forward.1} parent=1 // pred_region
      %s83 = ssub.s32 16, 16
      %84 = vsyncadd [#allocation12], %s83
      %s86 = sshll.u32 [#allocation11], 4
      %s87 = int_to_ptr.vmem [resolvable:$true] %s86
      %89 = dma.hbm_to_vmem [thread:$0]  %s5, 16, %s87, [#allocation12]
    $region25: #{tree_regressor_forward.1} parent=1 // pred_fallthru
      _
    // Predicated region
    $region26: #{tree_regressor_forward.1} parent=1 // pred_check
      _
    $region27: #{tree_regressor_forward.1} parent=1 // pred_check_branch
      %91 = sbr.rel (0) target = $region29
    $region28: #{tree_regressor_forward.1} parent=1 // pred_region
      %s93 = ssub.s32 1024, 1024
      %94 = vsyncadd [#allocation12], %s93
      %s95 = sshll.u32 [#allocation13], 4
      %s96 = int_to_ptr.vmem [resolvable:$true] %s95
      %101 = dma.hbm_to_vmem [thread:$0]  %s6, 1024, %s96, [#allocation12], 64, 64, 4
    $region29: #{tree_regressor_forward.1} parent=1 // pred_fallthru
      _
    // Predicated region
    $region30: #{tree_regressor_forward.1} parent=1 // pred_check
      _
    $region31: #{tree_regressor_forward.1} parent=1 // pred_check_branch
      %103 = sbr.rel (0) target = $region33
    $region32: #{tree_regressor_forward.1} parent=1 // pred_region
      %s105 = ssub.s32 16, 16
      %106 = vsyncadd [#allocation15], %s105
      %s108 = sshll.u32 [#allocation14], 4
      %s109 = int_to_ptr.vmem [resolvable:$true] %s108
      %111 = dma.hbm_to_vmem [thread:$0]  %s7, 16, %s109, [#allocation15]
    $region33: #{tree_regressor_forward.1} parent=1 // pred_fallthru
      _
    // Predicated region
    $region34: #{tree_regressor_forward.1} parent=1 // pred_check
      _
    $region35: #{tree_regressor_forward.1} parent=1 // pred_check_branch
      %113 = sbr.rel (0) target = $region37
    $region36: #{tree_regressor_forward.1} parent=1 // pred_region
      %s115 = ssub.s32 1024, 1024
      %116 = vsyncadd [#allocation15], %s115
      %s117 = sshll.u32 [#allocation16], 4
      %s118 = int_to_ptr.vmem [resolvable:$true] %s117
      %123 = dma.hbm_to_vmem [thread:$0]  %s8, 1024, %s118, [#allocation15], 64, 64, 4
    $region37: #{tree_regressor_forward.1} parent=1 // pred_fallthru
      _
    // Predicated region
    $region38: #{tree_regressor_forward.1} parent=1 // pred_check
      _
    $region39: #{tree_regressor_forward.1} parent=1 // pred_check_branch
      %125 = sbr.rel (0) target = $region41
    $region40: #{tree_regressor_forward.1} parent=1 // pred_region
      %s127 = ssub.s32 16, 16
      %128 = vsyncadd [#allocation18], %s127
      %s130 = sshll.u32 [#allocation17], 4
      %s131 = int_to_ptr.vmem [resolvable:$true] %s130
      %133 = dma.hbm_to_vmem [thread:$0]  %s9, 16, %s131, [#allocation18]
    $region41: #{tree_regressor_forward.1} parent=1 // pred_fallthru
      _
    // Predicated region
    $region42: #{tree_regressor_forward.1} parent=1 // pred_check
      _
    $region43: #{tree_regressor_forward.1} parent=1 // pred_check_branch
      %135 = sbr.rel (0) target = $region45
    $region44: #{tree_regressor_forward.1} parent=1 // pred_region
      %136 = dma.done [#allocation3], 4096
    $region45: #{tree_regressor_forward.1} parent=1 // pred_fallthru
      _
    // Predicated region
    $region46: #{tree_regressor_forward.1} parent=1 // pred_check
      _
    $region47: #{tree_regressor_forward.1} parent=1 // pred_check_branch
      %138 = sbr.rel (0) target = $region49
    $region48: #{tree_regressor_forward.1} parent=1 // pred_region
      %139 = dma.done [#allocation6], 2048
    $region49: #{tree_regressor_forward.1} parent=1 // pred_fallthru
      _
    // Predicated region
    $region50: #{tree_regressor_forward.1} parent=1 // pred_check
      _
    $region51: #{tree_regressor_forward.1} parent=1 // pred_check_branch
      %141 = sbr.rel (0) target = $region53
    $region52: #{tree_regressor_forward.1} parent=1 // pred_region
      %142 = dma.done [#allocation6], 512
    $region53: #{tree_regressor_forward.1} parent=1 // pred_fallthru
      _
    // Predicated region
    $region54: #{tree_regressor_forward.1} parent=1 // pred_check
      _
    $region55: #{tree_regressor_forward.1} parent=1 // pred_check_branch
      %144 = sbr.rel (0) target = $region57
    $region56: #{tree_regressor_forward.1} parent=1 // pred_region
      %145 = dma.done [#allocation9], 16
    $region57: #{tree_regressor_forward.1} parent=1 // pred_fallthru
      _
    // Predicated region
    $region58: #{tree_regressor_forward.1} parent=1 // pred_check
      _
    $region59: #{tree_regressor_forward.1} parent=1 // pred_check_branch
      %147 = sbr.rel (0) target = $region61
    $region60: #{tree_regressor_forward.1} parent=1 // pred_region
      %148 = dma.done [#allocation9], 1024
    $region61: #{tree_regressor_forward.1} parent=1 // pred_fallthru
      _
    // Predicated region
    $region62: #{tree_regressor_forward.1} parent=1 // pred_check
      _
    $region63: #{tree_regressor_forward.1} parent=1 // pred_check_branch
      %150 = sbr.rel (0) target = $region65
    $region64: #{tree_regressor_forward.1} parent=1 // pred_region
      %151 = dma.done [#allocation12], 16
    $region65: #{tree_regressor_forward.1} parent=1 // pred_fallthru
      _
    // Predicated region
    $region66: #{tree_regressor_forward.1} parent=1 // pred_check
      _
    $region67: #{tree_regressor_forward.1} parent=1 // pred_check_branch
      %153 = sbr.rel (0) target = $region69
    $region68: #{tree_regressor_forward.1} parent=1 // pred_region
      %154 = dma.done [#allocation12], 1024
    $region69: #{tree_regressor_forward.1} parent=1 // pred_fallthru
      _
    // Predicated region
    $region70: #{tree_regressor_forward.1} parent=1 // pred_check
      _
    $region71: #{tree_regressor_forward.1} parent=1 // pred_check_branch
      %156 = sbr.rel (0) target = $region73
    $region72: #{tree_regressor_forward.1} parent=1 // pred_region
      %157 = dma.done [#allocation15], 16
    $region73: #{tree_regressor_forward.1} parent=1 // pred_fallthru
      _
    // Predicated region
    $region74: #{tree_regressor_forward.1} parent=1 // pred_check
      _
    $region75: #{tree_regressor_forward.1} parent=1 // pred_check_branch
      %159 = sbr.rel (0) target = $region77
    $region76: #{tree_regressor_forward.1} parent=1 // pred_region
      %160 = dma.done [#allocation15], 1024
    $region77: #{tree_regressor_forward.1} parent=1 // pred_fallthru
      _
    // Predicated region
    $region78: #{tree_regressor_forward.1} parent=1 // pred_check
      _
    $region79: #{tree_regressor_forward.1} parent=1 // pred_check_branch
      %162 = sbr.rel (0) target = $region81
    $region80: #{tree_regressor_forward.1} parent=1 // pred_region
      %163 = dma.done [#allocation18], 16
    $region81: #{tree_regressor_forward.1} parent=1 // pred_fallthru
      _
    %v165 = vld [vmem:[#allocation2] sm:$0xff]
    %v166 = vld [vmem:[#allocation2 + $0x8] sm:$0xff]
    %v167 = vld [vmem:[#allocation2 + $0x10] sm:$0xff]
    %v168 = vld [vmem:[#allocation2 + $0x18] sm:$0xff]
    %v169 = vld [vmem:[#allocation2 + $0x20] sm:$0xff]
    %v170 = vld [vmem:[#allocation2 + $0x28] sm:$0xff]
    %v171 = vld [vmem:[#allocation2 + $0x30] sm:$0xff]
    %v172 = vld [vmem:[#allocation2 + $0x38] sm:$0xff]
    %v173 = vld [vmem:[#allocation2 + $0x40] sm:$0xff]
    %v174 = vld [vmem:[#allocation2 + $0x48] sm:$0xff]
    %v175 = vld [vmem:[#allocation2 + $0x50] sm:$0xff]
    %v176 = vld [vmem:[#allocation2 + $0x58] sm:$0xff]
    %v177 = vld [vmem:[#allocation2 + $0x60] sm:$0xff]
    %v178 = vld [vmem:[#allocation2 + $0x68] sm:$0xff]
    %v179 = vld [vmem:[#allocation2 + $0x70] sm:$0xff]
    %v180 = vld [vmem:[#allocation2 + $0x78] sm:$0xff]
    %v181 = vld [vmem:[#allocation2 + $0x80] sm:$0xff]
    %v182 = vld [vmem:[#allocation2 + $0x88] sm:$0xff]
    %v183 = vld [vmem:[#allocation2 + $0x90] sm:$0xff]
    %v184 = vld [vmem:[#allocation2 + $0x98] sm:$0xff]
    %v185 = vld [vmem:[#allocation2 + $0xa0] sm:$0xff]
    %v186 = vld [vmem:[#allocation2 + $0xa8] sm:$0xff]
    %v187 = vld [vmem:[#allocation2 + $0xb0] sm:$0xff]
    %v188 = vld [vmem:[#allocation2 + $0xb8] sm:$0xff]
    %v189 = vld [vmem:[#allocation2 + $0xc0] sm:$0xff]
    %v190 = vld [vmem:[#allocation2 + $0xc8] sm:$0xff]
    %v191 = vld [vmem:[#allocation2 + $0xd0] sm:$0xff]
    %v192 = vld [vmem:[#allocation2 + $0xd8] sm:$0xff]
    %v193 = vld [vmem:[#allocation2 + $0xe0] sm:$0xff]
    %v194 = vld [vmem:[#allocation2 + $0xe8] sm:$0xff]
    %v195 = vld [vmem:[#allocation2 + $0xf0] sm:$0xff]
    %v196 = vld [vmem:[#allocation2 + $0xf8] sm:$0xff]
    %v197 = vld [vmem:[#allocation5] sm:$0xf]
    %v198 = vld [vmem:[#allocation5 + $0x4] sm:$0xf]
    %v199 = vld [vmem:[#allocation5 + $0x8] sm:$0xf]
    %v200 = vld [vmem:[#allocation5 + $0xc] sm:$0xf]
    %v201 = vld [vmem:[#allocation5 + $0x10] sm:$0xf]
    %v202 = vld [vmem:[#allocation5 + $0x14] sm:$0xf]
    %v203 = vld [vmem:[#allocation5 + $0x18] sm:$0xf]
    %v204 = vld [vmem:[#allocation5 + $0x1c] sm:$0xf]
    %v205 = vld [vmem:[#allocation5 + $0x20] sm:$0xf]
    %v206 = vld [vmem:[#allocation5 + $0x24] sm:$0xf]
    %v207 = vld [vmem:[#allocation5 + $0x28] sm:$0xf]
    %v208 = vld [vmem:[#allocation5 + $0x2c] sm:$0xf]
    %v209 = vld [vmem:[#allocation5 + $0x30] sm:$0xf]
    %v210 = vld [vmem:[#allocation5 + $0x34] sm:$0xf]
    %v211 = vld [vmem:[#allocation5 + $0x38] sm:$0xf]
    %v212 = vld [vmem:[#allocation5 + $0x3c] sm:$0xf]
    %v213 = vld [vmem:[#allocation5 + $0x40] sm:$0xf]
    %v214 = vld [vmem:[#allocation5 + $0x44] sm:$0xf]
    %v215 = vld [vmem:[#allocation5 + $0x48] sm:$0xf]
    %v216 = vld [vmem:[#allocation5 + $0x4c] sm:$0xf]
    %v217 = vld [vmem:[#allocation5 + $0x50] sm:$0xf]
    %v218 = vld [vmem:[#allocation5 + $0x54] sm:$0xf]
    %v219 = vld [vmem:[#allocation5 + $0x58] sm:$0xf]
    %v220 = vld [vmem:[#allocation5 + $0x5c] sm:$0xf]
    %v221 = vld [vmem:[#allocation5 + $0x60] sm:$0xf]
    %v222 = vld [vmem:[#allocation5 + $0x64] sm:$0xf]
    %v223 = vld [vmem:[#allocation5 + $0x68] sm:$0xf]
    %v224 = vld [vmem:[#allocation5 + $0x6c] sm:$0xf]
    %v225 = vld [vmem:[#allocation5 + $0x70] sm:$0xf]
    %v226 = vld [vmem:[#allocation5 + $0x74] sm:$0xf]
    %v227 = vld [vmem:[#allocation5 + $0x78] sm:$0xf]
    %v228 = vld [vmem:[#allocation5 + $0x7c] sm:$0xf]
    %v229 = vld [vmem:[#allocation8] sm:$0x1]
    %v231 = vlaneseq
    %v232 = vshrl.u32 %v231, 7
    %v233 = vsub.s32 0, %v232
    %v234 = vrot.slane %v229, %v233
    %v268 = vunpack.c.l.b16 %v165
    %v269 = vunpack.c.h.b16 %v165
    %v270 = vunpack.c.l.b16 %v166
    %v271 = vunpack.c.h.b16 %v166
    %v272 = vunpack.c.l.b16 %v167
    %v273 = vunpack.c.h.b16 %v167
    %v274 = vunpack.c.l.b16 %v168
    %v275 = vunpack.c.h.b16 %v168
    %v276 = vunpack.c.l.b16 %v169
    %v277 = vunpack.c.h.b16 %v169
    %v278 = vunpack.c.l.b16 %v170
    %v279 = vunpack.c.h.b16 %v170
    %v280 = vunpack.c.l.b16 %v171
    %v281 = vunpack.c.h.b16 %v171
    %v282 = vunpack.c.l.b16 %v172
    %v283 = vunpack.c.h.b16 %v172
    %v284 = vunpack.c.l.b16 %v173
    %v285 = vunpack.c.h.b16 %v173
    %v286 = vunpack.c.l.b16 %v174
    %v287 = vunpack.c.h.b16 %v174
    %v288 = vunpack.c.l.b16 %v175
    %v289 = vunpack.c.h.b16 %v175
    %v290 = vunpack.c.l.b16 %v176
    %v291 = vunpack.c.h.b16 %v176
    %v292 = vunpack.c.l.b16 %v177
    %v293 = vunpack.c.h.b16 %v177
    %v294 = vunpack.c.l.b16 %v178
    %v295 = vunpack.c.h.b16 %v178
    %v296 = vunpack.c.l.b16 %v179
    %v297 = vunpack.c.h.b16 %v179
    %v298 = vunpack.c.l.b16 %v180
    %v299 = vunpack.c.h.b16 %v180
    %v300 = vunpack.c.l.b16 %v181
    %v301 = vunpack.c.h.b16 %v181
    %v302 = vunpack.c.l.b16 %v182
    %v303 = vunpack.c.h.b16 %v182
    %v304 = vunpack.c.l.b16 %v183
    %v305 = vunpack.c.h.b16 %v183
    %v306 = vunpack.c.l.b16 %v184
    %v307 = vunpack.c.h.b16 %v184
    %v308 = vunpack.c.l.b16 %v185
    %v309 = vunpack.c.h.b16 %v185
    %v310 = vunpack.c.l.b16 %v186
    %v311 = vunpack.c.h.b16 %v186
    %v312 = vunpack.c.l.b16 %v187
    %v313 = vunpack.c.h.b16 %v187
    %v314 = vunpack.c.l.b16 %v188
    %v315 = vunpack.c.h.b16 %v188
    %v316 = vunpack.c.l.b16 %v189
    %v317 = vunpack.c.h.b16 %v189
    %v318 = vunpack.c.l.b16 %v190
    %v319 = vunpack.c.h.b16 %v190
    %v320 = vunpack.c.l.b16 %v191
    %v321 = vunpack.c.h.b16 %v191
    %v322 = vunpack.c.l.b16 %v192
    %v323 = vunpack.c.h.b16 %v192
    %v324 = vunpack.c.l.b16 %v193
    %v325 = vunpack.c.h.b16 %v193
    %v326 = vunpack.c.l.b16 %v194
    %v327 = vunpack.c.h.b16 %v194
    %v328 = vunpack.c.l.b16 %v195
    %v329 = vunpack.c.h.b16 %v195
    %v330 = vunpack.c.l.b16 %v196
    %v331 = vunpack.c.h.b16 %v196
    %v332 = vpack.c.b16 %v270, %v268
    %v333 = vpack.c.b16 %v271, %v269
    %v334 = vpack.c.b16 %v274, %v272
    %v335 = vpack.c.b16 %v275, %v273
    %v336 = vpack.c.b16 %v278, %v276
    %v337 = vpack.c.b16 %v279, %v277
    %v338 = vpack.c.b16 %v282, %v280
    %v339 = vpack.c.b16 %v283, %v281
    %v340 = vpack.c.b16 %v286, %v284
    %v341 = vpack.c.b16 %v287, %v285
    %v342 = vpack.c.b16 %v290, %v288
    %v343 = vpack.c.b16 %v291, %v289
    %v344 = vpack.c.b16 %v294, %v292
    %v345 = vpack.c.b16 %v295, %v293
    %v346 = vpack.c.b16 %v298, %v296
    %v347 = vpack.c.b16 %v299, %v297
    %v348 = vpack.c.b16 %v302, %v300
    %v349 = vpack.c.b16 %v303, %v301
    %v350 = vpack.c.b16 %v306, %v304
    %v351 = vpack.c.b16 %v307, %v305
    %v352 = vpack.c.b16 %v310, %v308
    %v353 = vpack.c.b16 %v311, %v309
    %v354 = vpack.c.b16 %v314, %v312
    %v355 = vpack.c.b16 %v315, %v313
    %v356 = vpack.c.b16 %v318, %v316
    %v357 = vpack.c.b16 %v319, %v317
    %v358 = vpack.c.b16 %v322, %v320
    %v359 = vpack.c.b16 %v323, %v321
    %v360 = vpack.c.b16 %v326, %v324
    %v361 = vpack.c.b16 %v327, %v325
    %v362 = vpack.c.b16 %v330, %v328
    %v363 = vpack.c.b16 %v331, %v329
    %v428 = vunpack.c.l.b16 %v197
    %v429 = vunpack.c.l.b16 %v198
    %v430 = vunpack.c.l.b16 %v199
    %v431 = vunpack.c.l.b16 %v200
    %v432 = vunpack.c.l.b16 %v201
    %v433 = vunpack.c.l.b16 %v202
    %v434 = vunpack.c.l.b16 %v203
    %v435 = vunpack.c.l.b16 %v204
    %v436 = vunpack.c.l.b16 %v205
    %v437 = vunpack.c.l.b16 %v206
    %v438 = vunpack.c.l.b16 %v207
    %v439 = vunpack.c.l.b16 %v208
    %v440 = vunpack.c.l.b16 %v209
    %v441 = vunpack.c.l.b16 %v210
    %v442 = vunpack.c.l.b16 %v211
    %v443 = vunpack.c.l.b16 %v212
    %v444 = vunpack.c.l.b16 %v213
    %v445 = vunpack.c.l.b16 %v214
    %v446 = vunpack.c.l.b16 %v215
    %v447 = vunpack.c.l.b16 %v216
    %v448 = vunpack.c.l.b16 %v217
    %v449 = vunpack.c.l.b16 %v218
    %v450 = vunpack.c.l.b16 %v219
    %v451 = vunpack.c.l.b16 %v220
    %v452 = vunpack.c.l.b16 %v221
    %v453 = vunpack.c.l.b16 %v222
    %v454 = vunpack.c.l.b16 %v223
    %v455 = vunpack.c.l.b16 %v224
    %v456 = vunpack.c.l.b16 %v225
    %v457 = vunpack.c.l.b16 %v226
    %v458 = vunpack.c.l.b16 %v227
    %v459 = vunpack.c.l.b16 %v228
    %v460 = vpack.c.b16 %v429, %v428
    %v461 = vpack.c.b16 %v431, %v430
    %v462 = vpack.c.b16 %v433, %v432
    %v463 = vpack.c.b16 %v435, %v434
    %v464 = vpack.c.b16 %v437, %v436
    %v465 = vpack.c.b16 %v439, %v438
    %v466 = vpack.c.b16 %v441, %v440
    %v467 = vpack.c.b16 %v443, %v442
    %v468 = vpack.c.b16 %v445, %v444
    %v469 = vpack.c.b16 %v447, %v446
    %v470 = vpack.c.b16 %v449, %v448
    %v471 = vpack.c.b16 %v451, %v450
    %v472 = vpack.c.b16 %v453, %v452
    %v473 = vpack.c.b16 %v455, %v454
    %v474 = vpack.c.b16 %v457, %v456
    %v475 = vpack.c.b16 %v459, %v458
    %492 = vmatprep.subr.bf16.mxu0 0
    %493 = vmatpush1.bf16.msra.mxu0 %v460
    %494 = vmatprep.subr.bf16.mxu0 0
    %495 = vmatpush1.bf16.msra.mxu0 %v461
    %496 = vmatprep.subr.bf16.mxu0 0
    %497 = vmatpush1.bf16.msra.mxu0 %v462
    %498 = vmatprep.subr.bf16.mxu0 0
    %499 = vmatpush1.bf16.msra.mxu0 %v463
    %500 = vmatprep.subr.bf16.mxu0 0
    %501 = vmatpush1.bf16.msra.mxu0 %v464
    %502 = vmatprep.subr.bf16.mxu0 0
    %503 = vmatpush1.bf16.msra.mxu0 %v465
    %504 = vmatprep.subr.bf16.mxu0 0
    %505 = vmatpush1.bf16.msra.mxu0 %v466
    %506 = vmatprep.subr.bf16.mxu0 0
    %507 = vmatpush1.bf16.msra.mxu0 %v467
    %508 = vmatprep.subr.bf16.mxu0 0
    %509 = vmatpush1.bf16.msra.mxu0 %v468
    %510 = vmatprep.subr.bf16.mxu0 0
    %511 = vmatpush1.bf16.msra.mxu0 %v469
    %512 = vmatprep.subr.bf16.mxu0 0
    %513 = vmatpush1.bf16.msra.mxu0 %v470
    %514 = vmatprep.subr.bf16.mxu0 0
    %515 = vmatpush1.bf16.msra.mxu0 %v471
    %516 = vmatprep.subr.bf16.mxu0 0
    %517 = vmatpush1.bf16.msra.mxu0 %v472
    %518 = vmatprep.subr.bf16.mxu0 0
    %519 = vmatpush1.bf16.msra.mxu0 %v473
    %520 = vmatprep.subr.bf16.mxu0 0
    %521 = vmatpush1.bf16.msra.mxu0 %v474
    %522 = vmatprep.subr.bf16.mxu0 0
    %523 = vmatpush1.bf16.msra.mxu0 %v475
    %524 = vmatprep.mubr.bf16.mxu0 %v333
    %525 = vmatmul.mubr.bf16.gmra.mrb[0].mxu0 %v332
    %v526 = vpop.f32.mrb[0].mxu0
    %v527 = vadd.f32 %v234, %v526
    %v528 = vpop.f32.mrb[0].mxu0
    %v529 = vpop.f32.mrb[0].mxu0
    %v530 = vadd.f32 %v234, %v529
    %v531 = vpop.f32.mrb[0].mxu0
    %532 = vmatprep.mubr.bf16.mxu0 %v335
    %533 = vmatmul.mubr.bf16.gmra.mrb[0].mxu0 %v334
    %v534 = vpop.f32.mrb[0].mxu0
    %v535 = vadd.f32 %v234, %v534
    %v536 = vpop.f32.mrb[0].mxu0
    %v537 = vpop.f32.mrb[0].mxu0
    %v538 = vadd.f32 %v234, %v537
    %v539 = vpop.f32.mrb[0].mxu0
    %540 = vmatprep.mubr.bf16.mxu0 %v337
    %541 = vmatmul.mubr.bf16.gmra.mrb[0].mxu0 %v336
    %v542 = vpop.f32.mrb[0].mxu0
    %v543 = vadd.f32 %v234, %v542
    %v544 = vpop.f32.mrb[0].mxu0
    %v545 = vpop.f32.mrb[0].mxu0
    %v546 = vadd.f32 %v234, %v545
    %v547 = vpop.f32.mrb[0].mxu0
    %548 = vmatprep.mubr.bf16.mxu0 %v339
    %549 = vmatmul.mubr.bf16.gmra.mrb[0].mxu0 %v338
    %v550 = vpop.f32.mrb[0].mxu0
    %v551 = vadd.f32 %v234, %v550
    %v552 = vpop.f32.mrb[0].mxu0
    %v553 = vpop.f32.mrb[0].mxu0
    %v554 = vadd.f32 %v234, %v553
    %v555 = vpop.f32.mrb[0].mxu0
    %556 = vmatprep.mubr.bf16.mxu0 %v341
    %557 = vmatmul.mubr.bf16.gmra.mrb[0].mxu0 %v340
    %v558 = vpop.f32.mrb[0].mxu0
    %v559 = vadd.f32 %v234, %v558
    %v560 = vpop.f32.mrb[0].mxu0
    %v561 = vpop.f32.mrb[0].mxu0
    %v562 = vadd.f32 %v234, %v561
    %v563 = vpop.f32.mrb[0].mxu0
    %564 = vmatprep.mubr.bf16.mxu0 %v343
    %565 = vmatmul.mubr.bf16.gmra.mrb[0].mxu0 %v342
    %v566 = vpop.f32.mrb[0].mxu0
    %v567 = vadd.f32 %v234, %v566
    %v568 = vpop.f32.mrb[0].mxu0
    %v569 = vpop.f32.mrb[0].mxu0
    %v570 = vadd.f32 %v234, %v569
    %v571 = vpop.f32.mrb[0].mxu0
    %572 = vmatprep.mubr.bf16.mxu0 %v345
    %573 = vmatmul.mubr.bf16.gmra.mrb[0].mxu0 %v344
    %v574 = vpop.f32.mrb[0].mxu0
    %v575 = vadd.f32 %v234, %v574
    %v576 = vpop.f32.mrb[0].mxu0
    %v577 = vpop.f32.mrb[0].mxu0
    %v578 = vadd.f32 %v234, %v577
    %v579 = vpop.f32.mrb[0].mxu0
    %580 = vmatprep.mubr.bf16.mxu0 %v347
    %581 = vmatmul.mubr.bf16.gmra.mrb[0].mxu0 %v346
    %v582 = vpop.f32.mrb[0].mxu0
    %v583 = vadd.f32 %v234, %v582
    %v584 = vpop.f32.mrb[0].mxu0
    %v585 = vpop.f32.mrb[0].mxu0
    %v586 = vadd.f32 %v234, %v585
    %v587 = vpop.f32.mrb[0].mxu0
    %588 = vmatprep.mubr.bf16.mxu0 %v349
    %589 = vmatmul.mubr.bf16.gmra.mrb[0].mxu0 %v348
    %v590 = vpop.f32.mrb[0].mxu0
    %v591 = vadd.f32 %v234, %v590
    %v592 = vpop.f32.mrb[0].mxu0
    %v593 = vpop.f32.mrb[0].mxu0
    %v594 = vadd.f32 %v234, %v593
    %v595 = vpop.f32.mrb[0].mxu0
    %596 = vmatprep.mubr.bf16.mxu0 %v351
    %597 = vmatmul.mubr.bf16.gmra.mrb[0].mxu0 %v350
    %v598 = vpop.f32.mrb[0].mxu0
    %v599 = vadd.f32 %v234, %v598
    %v600 = vpop.f32.mrb[0].mxu0
    %v601 = vpop.f32.mrb[0].mxu0
    %v602 = vadd.f32 %v234, %v601
    %v603 = vpop.f32.mrb[0].mxu0
    %604 = vmatprep.mubr.bf16.mxu0 %v353
    %605 = vmatmul.mubr.bf16.gmra.mrb[0].mxu0 %v352
    %v606 = vpop.f32.mrb[0].mxu0
    %v607 = vadd.f32 %v234, %v606
    %v608 = vpop.f32.mrb[0].mxu0
    %v609 = vpop.f32.mrb[0].mxu0
    %v610 = vadd.f32 %v234, %v609
    %v611 = vpop.f32.mrb[0].mxu0
    %612 = vmatprep.mubr.bf16.mxu0 %v355
    %613 = vmatmul.mubr.bf16.gmra.mrb[0].mxu0 %v354
    %v614 = vpop.f32.mrb[0].mxu0
    %v615 = vadd.f32 %v234, %v614
    %v616 = vpop.f32.mrb[0].mxu0
    %v617 = vpop.f32.mrb[0].mxu0
    %v618 = vadd.f32 %v234, %v617
    %v619 = vpop.f32.mrb[0].mxu0
    %620 = vmatprep.mubr.bf16.mxu0 %v357
    %621 = vmatmul.mubr.bf16.gmra.mrb[0].mxu0 %v356
    %v622 = vpop.f32.mrb[0].mxu0
    %v623 = vadd.f32 %v234, %v622
    %v624 = vpop.f32.mrb[0].mxu0
    %v625 = vpop.f32.mrb[0].mxu0
    %v626 = vadd.f32 %v234, %v625
    %v627 = vpop.f32.mrb[0].mxu0
    %628 = vmatprep.mubr.bf16.mxu0 %v359
    %629 = vmatmul.mubr.bf16.gmra.mrb[0].mxu0 %v358
    %v630 = vpop.f32.mrb[0].mxu0
    %v631 = vadd.f32 %v234, %v630
    %v632 = vpop.f32.mrb[0].mxu0
    %v633 = vpop.f32.mrb[0].mxu0
    %v634 = vadd.f32 %v234, %v633
    %v635 = vpop.f32.mrb[0].mxu0
    %636 = vmatprep.mubr.bf16.mxu0 %v361
    %637 = vmatmul.mubr.bf16.gmra.mrb[0].mxu0 %v360
    %v638 = vpop.f32.mrb[0].mxu0
    %v639 = vadd.f32 %v234, %v638
    %v640 = vpop.f32.mrb[0].mxu0
    %v641 = vpop.f32.mrb[0].mxu0
    %v642 = vadd.f32 %v234, %v641
    %v643 = vpop.f32.mrb[0].mxu0
    %644 = vmatprep.mubr.bf16.mxu0 %v363
    %645 = vmatmul.mubr.bf16.gmra.mrb[0].mxu0 %v362
    %v646 = vpop.f32.mrb[0].mxu0
    %v647 = vadd.f32 %v234, %v646
    %v648 = vpop.f32.mrb[0].mxu0
    %v649 = vpop.f32.mrb[0].mxu0
    %v650 = vadd.f32 %v234, %v649
    %v651 = vpop.f32.mrb[0].mxu0
    %652 = vdwg.mxu0
    %v653 = vmax.f32 %v527, 0.0
    %v654 = vmax.f32 %v530, 0.0
    %v655 = vmax.f32 %v535, 0.0
    %v656 = vmax.f32 %v538, 0.0
    %v657 = vmax.f32 %v543, 0.0
    %v658 = vmax.f32 %v546, 0.0
    %v659 = vmax.f32 %v551, 0.0
    %v660 = vmax.f32 %v554, 0.0
    %v661 = vmax.f32 %v559, 0.0
    %v662 = vmax.f32 %v562, 0.0
    %v663 = vmax.f32 %v567, 0.0
    %v664 = vmax.f32 %v570, 0.0
    %v665 = vmax.f32 %v575, 0.0
    %v666 = vmax.f32 %v578, 0.0
    %v667 = vmax.f32 %v583, 0.0
    %v668 = vmax.f32 %v586, 0.0
    %v669 = vmax.f32 %v591, 0.0
    %v670 = vmax.f32 %v594, 0.0
    %v671 = vmax.f32 %v599, 0.0
    %v672 = vmax.f32 %v602, 0.0
    %v673 = vmax.f32 %v607, 0.0
    %v674 = vmax.f32 %v610, 0.0
    %v675 = vmax.f32 %v615, 0.0
    %v676 = vmax.f32 %v618, 0.0
    %v677 = vmax.f32 %v623, 0.0
    %v678 = vmax.f32 %v626, 0.0
    %v679 = vmax.f32 %v631, 0.0
    %v680 = vmax.f32 %v634, 0.0
    %v681 = vmax.f32 %v639, 0.0
    %v682 = vmax.f32 %v642, 0.0
    %v683 = vmax.f32 %v647, 0.0
    %v684 = vmax.f32 %v650, 0.0
    %v685 = vpack.c.bf16 %v654, %v653
    %v686 = vpack.c.bf16 %v656, %v655
    %v687 = vpack.c.bf16 %v658, %v657
    %v688 = vpack.c.bf16 %v660, %v659
    %v689 = vpack.c.bf16 %v662, %v661
    %v690 = vpack.c.bf16 %v664, %v663
    %v691 = vpack.c.bf16 %v666, %v665
    %v692 = vpack.c.bf16 %v668, %v667
    %v693 = vpack.c.bf16 %v670, %v669
    %v694 = vpack.c.bf16 %v672, %v671
    %v695 = vpack.c.bf16 %v674, %v673
    %v696 = vpack.c.bf16 %v676, %v675
    %v697 = vpack.c.bf16 %v678, %v677
    %v698 = vpack.c.bf16 %v680, %v679
    %v699 = vpack.c.bf16 %v682, %v681
    %v700 = vpack.c.bf16 %v684, %v683
    %v701 = vld [vmem:[#allocation10] sm:$0xf]
    %v702 = vld [vmem:[#allocation10 + $0x4] sm:$0xf]
    %v703 = vld [vmem:[#allocation10 + $0x8] sm:$0xf]
    %v704 = vld [vmem:[#allocation10 + $0xc] sm:$0xf]
    %v705 = vld [vmem:[#allocation10 + $0x10] sm:$0xf]
    %v706 = vld [vmem:[#allocation10 + $0x14] sm:$0xf]
    %v707 = vld [vmem:[#allocation10 + $0x18] sm:$0xf]
    %v708 = vld [vmem:[#allocation10 + $0x1c] sm:$0xf]
    %v709 = vld [vmem:[#allocation10 + $0x20] sm:$0xf]
    %v710 = vld [vmem:[#allocation10 + $0x24] sm:$0xf]
    %v711 = vld [vmem:[#allocation10 + $0x28] sm:$0xf]
    %v712 = vld [vmem:[#allocation10 + $0x2c] sm:$0xf]
    %v713 = vld [vmem:[#allocation10 + $0x30] sm:$0xf]
    %v714 = vld [vmem:[#allocation10 + $0x34] sm:$0xf]
    %v715 = vld [vmem:[#allocation10 + $0x38] sm:$0xf]
    %v716 = vld [vmem:[#allocation10 + $0x3c] sm:$0xf]
    %v717 = vld [vmem:[#allocation11] sm:$0x1]
    %v719 = vlaneseq
    %v720 = vshrl.u32 %v719, 7
    %v721 = vsub.s32 0, %v720
    %v722 = vrot.slane %v717, %v721
    %v740 = vunpack.c.l.b16 %v701
    %v741 = vunpack.c.l.b16 %v702
    %v742 = vunpack.c.l.b16 %v703
    %v743 = vunpack.c.l.b16 %v704
    %v744 = vunpack.c.l.b16 %v705
    %v745 = vunpack.c.l.b16 %v706
    %v746 = vunpack.c.l.b16 %v707
    %v747 = vunpack.c.l.b16 %v708
    %v748 = vunpack.c.l.b16 %v709
    %v749 = vunpack.c.l.b16 %v710
    %v750 = vunpack.c.l.b16 %v711
    %v751 = vunpack.c.l.b16 %v712
    %v752 = vunpack.c.l.b16 %v713
    %v753 = vunpack.c.l.b16 %v714
    %v754 = vunpack.c.l.b16 %v715
    %v755 = vunpack.c.l.b16 %v716
    %v756 = vpack.c.b16 %v741, %v740
    %v757 = vpack.c.b16 %v743, %v742
    %v758 = vpack.c.b16 %v745, %v744
    %v759 = vpack.c.b16 %v747, %v746
    %v760 = vpack.c.b16 %v749, %v748
    %v761 = vpack.c.b16 %v751, %v750
    %v762 = vpack.c.b16 %v753, %v752
    %v763 = vpack.c.b16 %v755, %v754
    %772 = vmatprep.subr.bf16.mxu0 0
    %773 = vmatpush1.bf16.msra.mxu0 %v756
    %774 = vmatprep.subr.bf16.mxu0 0
    %775 = vmatpush1.bf16.msra.mxu0 %v757
    %776 = vmatprep.subr.bf16.mxu0 0
    %777 = vmatpush1.bf16.msra.mxu0 %v758
    %778 = vmatprep.subr.bf16.mxu0 0
    %779 = vmatpush1.bf16.msra.mxu0 %v759
    %780 = vmatprep.subr.bf16.mxu0 0
    %781 = vmatpush1.bf16.msra.mxu0 %v760
    %782 = vmatprep.subr.bf16.mxu0 0
    %783 = vmatpush1.bf16.msra.mxu0 %v761
    %784 = vmatprep.subr.bf16.mxu0 0
    %785 = vmatpush1.bf16.msra.mxu0 %v762
    %786 = vmatprep.subr.bf16.mxu0 0
    %787 = vmatpush1.bf16.msra.mxu0 %v763
    %788 = vmatprep.subr.bf16.mxu0 0
    %789 = vmatpush1.bf16.msra.mxu0 0
    %790 = vmatprep.subr.bf16.mxu0 0
    %791 = vmatpush1.bf16.msra.mxu0 0
    %792 = vmatprep.subr.bf16.mxu0 0
    %793 = vmatpush1.bf16.msra.mxu0 0
    %794 = vmatprep.subr.bf16.mxu0 0
    %795 = vmatpush1.bf16.msra.mxu0 0
    %796 = vmatprep.subr.bf16.mxu0 0
    %797 = vmatpush1.bf16.msra.mxu0 0
    %798 = vmatprep.subr.bf16.mxu0 0
    %799 = vmatpush1.bf16.msra.mxu0 0
    %800 = vmatprep.subr.bf16.mxu0 0
    %801 = vmatpush1.bf16.msra.mxu0 0
    %802 = vmatprep.subr.bf16.mxu0 0
    %803 = vmatpush1.bf16.msra.mxu0 0
    %804 = vmatprep.mubr.bf16.mxu0 0
    %805 = vmatmul.mubr.bf16.gmra.mrb[0].mxu0 %v685
    %v806 = vpop.f32.mrb[0].mxu0
    %v807 = vadd.f32 %v722, %v806
    %v808 = vpop.f32.mrb[0].mxu0
    %v809 = vpop.f32.mrb[0].mxu0
    %v810 = vadd.f32 %v722, %v809
    %v811 = vpop.f32.mrb[0].mxu0
    %812 = vmatprep.mubr.bf16.mxu0 0
    %813 = vmatmul.mubr.bf16.gmra.mrb[0].mxu0 %v686
    %v814 = vpop.f32.mrb[0].mxu0
    %v815 = vadd.f32 %v722, %v814
    %v816 = vpop.f32.mrb[0].mxu0
    %v817 = vpop.f32.mrb[0].mxu0
    %v818 = vadd.f32 %v722, %v817
    %v819 = vpop.f32.mrb[0].mxu0
    %820 = vmatprep.mubr.bf16.mxu0 0
    %821 = vmatmul.mubr.bf16.gmra.mrb[0].mxu0 %v687
    %v822 = vpop.f32.mrb[0].mxu0
    %v823 = vadd.f32 %v722, %v822
    %v824 = vpop.f32.mrb[0].mxu0
    %v825 = vpop.f32.mrb[0].mxu0
    %v826 = vadd.f32 %v722, %v825
    %v827 = vpop.f32.mrb[0].mxu0
    %828 = vmatprep.mubr.bf16.mxu0 0
    %829 = vmatmul.mubr.bf16.gmra.mrb[0].mxu0 %v688
    %v830 = vpop.f32.mrb[0].mxu0
    %v831 = vadd.f32 %v722, %v830
    %v832 = vpop.f32.mrb[0].mxu0
    %v833 = vpop.f32.mrb[0].mxu0
    %v834 = vadd.f32 %v722, %v833
    %v835 = vpop.f32.mrb[0].mxu0
    %836 = vmatprep.mubr.bf16.mxu0 0
    %837 = vmatmul.mubr.bf16.gmra.mrb[0].mxu0 %v689
    %v838 = vpop.f32.mrb[0].mxu0
    %v839 = vadd.f32 %v722, %v838
    %v840 = vpop.f32.mrb[0].mxu0
    %v841 = vpop.f32.mrb[0].mxu0
    %v842 = vadd.f32 %v722, %v841
    %v843 = vpop.f32.mrb[0].mxu0
    %844 = vmatprep.mubr.bf16.mxu0 0
    %845 = vmatmul.mubr.bf16.gmra.mrb[0].mxu0 %v690
    %v846 = vpop.f32.mrb[0].mxu0
    %v847 = vadd.f32 %v722, %v846
    %v848 = vpop.f32.mrb[0].mxu0
    %v849 = vpop.f32.mrb[0].mxu0
    %v850 = vadd.f32 %v722, %v849
    %v851 = vpop.f32.mrb[0].mxu0
    %852 = vmatprep.mubr.bf16.mxu0 0
    %853 = vmatmul.mubr.bf16.gmra.mrb[0].mxu0 %v691
    %v854 = vpop.f32.mrb[0].mxu0
    %v855 = vadd.f32 %v722, %v854
    %v856 = vpop.f32.mrb[0].mxu0
    %v857 = vpop.f32.mrb[0].mxu0
    %v858 = vadd.f32 %v722, %v857
    %v859 = vpop.f32.mrb[0].mxu0
    %860 = vmatprep.mubr.bf16.mxu0 0
    %861 = vmatmul.mubr.bf16.gmra.mrb[0].mxu0 %v692
    %v862 = vpop.f32.mrb[0].mxu0
    %v863 = vadd.f32 %v722, %v862
    %v864 = vpop.f32.mrb[0].mxu0
    %v865 = vpop.f32.mrb[0].mxu0
    %v866 = vadd.f32 %v722, %v865
    %v867 = vpop.f32.mrb[0].mxu0
    %868 = vmatprep.mubr.bf16.mxu0 0
    %869 = vmatmul.mubr.bf16.gmra.mrb[0].mxu0 %v693
    %v870 = vpop.f32.mrb[0].mxu0
    %v871 = vadd.f32 %v722, %v870
    %v872 = vpop.f32.mrb[0].mxu0
    %v873 = vpop.f32.mrb[0].mxu0
    %v874 = vadd.f32 %v722, %v873
    %v875 = vpop.f32.mrb[0].mxu0
    %876 = vmatprep.mubr.bf16.mxu0 0
    %877 = vmatmul.mubr.bf16.gmra.mrb[0].mxu0 %v694
    %v878 = vpop.f32.mrb[0].mxu0
    %v879 = vadd.f32 %v722, %v878
    %v880 = vpop.f32.mrb[0].mxu0
    %v881 = vpop.f32.mrb[0].mxu0
    %v882 = vadd.f32 %v722, %v881
    %v883 = vpop.f32.mrb[0].mxu0
    %884 = vmatprep.mubr.bf16.mxu0 0
    %885 = vmatmul.mubr.bf16.gmra.mrb[0].mxu0 %v695
    %v886 = vpop.f32.mrb[0].mxu0
    %v887 = vadd.f32 %v722, %v886
    %v888 = vpop.f32.mrb[0].mxu0
    %v889 = vpop.f32.mrb[0].mxu0
    %v890 = vadd.f32 %v722, %v889
    %v891 = vpop.f32.mrb[0].mxu0
    %892 = vmatprep.mubr.bf16.mxu0 0
    %893 = vmatmul.mubr.bf16.gmra.mrb[0].mxu0 %v696
    %v894 = vpop.f32.mrb[0].mxu0
    %v895 = vadd.f32 %v722, %v894
    %v896 = vpop.f32.mrb[0].mxu0
    %v897 = vpop.f32.mrb[0].mxu0
    %v898 = vadd.f32 %v722, %v897
    %v899 = vpop.f32.mrb[0].mxu0
    %900 = vmatprep.mubr.bf16.mxu0 0
    %901 = vmatmul.mubr.bf16.gmra.mrb[0].mxu0 %v697
    %v902 = vpop.f32.mrb[0].mxu0
    %v903 = vadd.f32 %v722, %v902
    %v904 = vpop.f32.mrb[0].mxu0
    %v905 = vpop.f32.mrb[0].mxu0
    %v906 = vadd.f32 %v722, %v905
    %v907 = vpop.f32.mrb[0].mxu0
    %908 = vmatprep.mubr.bf16.mxu0 0
    %909 = vmatmul.mubr.bf16.gmra.mrb[0].mxu0 %v698
    %v910 = vpop.f32.mrb[0].mxu0
    %v911 = vadd.f32 %v722, %v910
    %v912 = vpop.f32.mrb[0].mxu0
    %v913 = vpop.f32.mrb[0].mxu0
    %v914 = vadd.f32 %v722, %v913
    %v915 = vpop.f32.mrb[0].mxu0
    %916 = vmatprep.mubr.bf16.mxu0 0
    %917 = vmatmul.mubr.bf16.gmra.mrb[0].mxu0 %v699
    %v918 = vpop.f32.mrb[0].mxu0
    %v919 = vadd.f32 %v722, %v918
    %v920 = vpop.f32.mrb[0].mxu0
    %v921 = vpop.f32.mrb[0].mxu0
    %v922 = vadd.f32 %v722, %v921
    %v923 = vpop.f32.mrb[0].mxu0
    %924 = vmatprep.mubr.bf16.mxu0 0
    %925 = vmatmul.mubr.bf16.gmra.mrb[0].mxu0 %v700
    %v926 = vpop.f32.mrb[0].mxu0
    %v927 = vadd.f32 %v722, %v926
    %v928 = vpop.f32.mrb[0].mxu0
    %v929 = vpop.f32.mrb[0].mxu0
    %v930 = vadd.f32 %v722, %v929
    %v931 = vpop.f32.mrb[0].mxu0
    %932 = vdwg.mxu0
    %v933 = vld [vmem:[#allocation7] sm:$0xff]
    %v934 = vld [vmem:[#allocation7 + $0x8] sm:$0xff]
    %v935 = vld [vmem:[#allocation7 + $0x10] sm:$0xff]
    %v936 = vld [vmem:[#allocation7 + $0x18] sm:$0xff]
    %937 = vmatprep.subr.mxu0 0.0
    %938 = vmatpush1.msra.mxu0 %v807
    %939 = vmatprep.subr.mxu0 0.0
    %940 = vmatpush1.msra.mxu0 %v810
    %941 = vmatprep.subr.mxu0 0.0
    %942 = vmatpush1.msra.mxu0 %v815
    %943 = vmatprep.subr.mxu0 0.0
    %944 = vmatpush1.msra.mxu0 %v818
    %945 = vmatprep.subr.mxu0 0.0
    %946 = vmatpush1.msra.mxu0 %v823
    %947 = vmatprep.subr.mxu0 0.0
    %948 = vmatpush1.msra.mxu0 %v826
    %949 = vmatprep.subr.mxu0 0.0
    %950 = vmatpush1.msra.mxu0 %v831
    %951 = vmatprep.subr.mxu0 0.0
    %952 = vmatpush1.msra.mxu0 %v834
    %953 = vmatprep.subr.mxu0 0.0
    %954 = vmatpush1.msra.mxu0 %v839
    %955 = vmatprep.subr.mxu0 0.0
    %956 = vmatpush1.msra.mxu0 %v842
    %957 = vmatprep.subr.mxu0 0.0
    %958 = vmatpush1.msra.mxu0 %v847
    %959 = vmatprep.subr.mxu0 0.0
    %960 = vmatpush1.msra.mxu0 %v850
    %961 = vmatprep.subr.mxu0 0.0
    %962 = vmatpush1.msra.mxu0 %v855
    %963 = vmatprep.subr.mxu0 0.0
    %964 = vmatpush1.msra.mxu0 %v858
    %965 = vmatprep.subr.mxu0 0.0
    %966 = vmatpush1.msra.mxu0 %v863
    %967 = vmatprep.subr.mxu0 0.0
    %968 = vmatpush1.msra.mxu0 %v866
    %969 = vmatprep.subr.mxu0 0.0
    %970 = vmatpush1.msra.mxu0 %v871
    %971 = vmatprep.subr.mxu0 0.0
    %972 = vmatpush1.msra.mxu0 %v874
    %973 = vmatprep.subr.mxu0 0.0
    %974 = vmatpush1.msra.mxu0 %v879
    %975 = vmatprep.subr.mxu0 0.0
    %976 = vmatpush1.msra.mxu0 %v882
    %977 = vmatprep.subr.mxu0 0.0
    %978 = vmatpush1.msra.mxu0 %v887
    %979 = vmatprep.subr.mxu0 0.0
    %980 = vmatpush1.msra.mxu0 %v890
    %981 = vmatprep.subr.mxu0 0.0
    %982 = vmatpush1.msra.mxu0 %v895
    %983 = vmatprep.subr.mxu0 0.0
    %984 = vmatpush1.msra.mxu0 %v898
    %985 = vmatprep.subr.mxu0 0.0
    %986 = vmatpush1.msra.mxu0 %v903
    %987 = vmatprep.subr.mxu0 0.0
    %988 = vmatpush1.msra.mxu0 %v906
    %989 = vmatprep.subr.mxu0 0.0
    %990 = vmatpush1.msra.mxu0 %v911
    %991 = vmatprep.subr.mxu0 0.0
    %992 = vmatpush1.msra.mxu0 %v914
    %993 = vmatprep.subr.mxu0 0.0
    %994 = vmatpush1.msra.mxu0 %v919
    %995 = vmatprep.subr.mxu0 0.0
    %996 = vmatpush1.msra.mxu0 %v922
    %997 = vmatprep.subr.mxu0 0.0
    %998 = vmatpush1.msra.mxu0 %v927
    %999 = vmatprep.subr.mxu0 0.0
    %1000 = vmatpush1.msra.mxu0 %v930
    %1001 = vmatprep.mubr.f32.mxu0 %v934
    %1002 = vmatmul.mubr.f32.gmra.mrb[0].mxu0 %v933
    %v1003 = vpop.f32.mrb[0].mxu0
    %v1004 = vadd.f32 0.0, %v1003
    %v1005 = vpop.f32.mrb[0].mxu0
    %1006 = vmatprep.mubr.f32.mxu0 %v936
    %1007 = vmatmul.mubr.f32.gmra.mrb[0].mxu0 %v935
    %v1008 = vpop.f32.mrb[0].mxu0
    %v1009 = vadd.f32 0.0, %v1008
    %v1010 = vpop.f32.mrb[0].mxu0
    %1011 = vdwg.mxu0
    %v1012 = vpack.c.bf16 %v1009, %v1004
    %v1013 = vld [vmem:[#allocation13] sm:$0xf]
    %v1014 = vld [vmem:[#allocation13 + $0x4] sm:$0xf]
    %v1015 = vld [vmem:[#allocation13 + $0x8] sm:$0xf]
    %v1016 = vld [vmem:[#allocation13 + $0xc] sm:$0xf]
    %v1017 = vld [vmem:[#allocation13 + $0x10] sm:$0xf]
    %v1018 = vld [vmem:[#allocation13 + $0x14] sm:$0xf]
    %v1019 = vld [vmem:[#allocation13 + $0x18] sm:$0xf]
    %v1020 = vld [vmem:[#allocation13 + $0x1c] sm:$0xf]
    %v1021 = vld [vmem:[#allocation13 + $0x20] sm:$0xf]
    %v1022 = vld [vmem:[#allocation13 + $0x24] sm:$0xf]
    %v1023 = vld [vmem:[#allocation13 + $0x28] sm:$0xf]
    %v1024 = vld [vmem:[#allocation13 + $0x2c] sm:$0xf]
    %v1025 = vld [vmem:[#allocation13 + $0x30] sm:$0xf]
    %v1026 = vld [vmem:[#allocation13 + $0x34] sm:$0xf]
    %v1027 = vld [vmem:[#allocation13 + $0x38] sm:$0xf]
    %v1028 = vld [vmem:[#allocation13 + $0x3c] sm:$0xf]
    %v1029 = vld [vmem:[#allocation14] sm:$0x1]
    %v1031 = vlaneseq
    %v1032 = vshrl.u32 %v1031, 7
    %v1033 = vsub.s32 0, %v1032
    %v1034 = vrot.slane %v1029, %v1033
    %v1052 = vunpack.c.l.b16 %v1013
    %v1053 = vunpack.c.l.b16 %v1014
    %v1054 = vunpack.c.l.b16 %v1015
    %v1055 = vunpack.c.l.b16 %v1016
    %v1056 = vunpack.c.l.b16 %v1017
    %v1057 = vunpack.c.l.b16 %v1018
    %v1058 = vunpack.c.l.b16 %v1019
    %v1059 = vunpack.c.l.b16 %v1020
    %v1060 = vunpack.c.l.b16 %v1021
    %v1061 = vunpack.c.l.b16 %v1022
    %v1062 = vunpack.c.l.b16 %v1023
    %v1063 = vunpack.c.l.b16 %v1024
    %v1064 = vunpack.c.l.b16 %v1025
    %v1065 = vunpack.c.l.b16 %v1026
    %v1066 = vunpack.c.l.b16 %v1027
    %v1067 = vunpack.c.l.b16 %v1028
    %v1068 = vpack.c.b16 %v1053, %v1052
    %v1069 = vpack.c.b16 %v1055, %v1054
    %v1070 = vpack.c.b16 %v1057, %v1056
    %v1071 = vpack.c.b16 %v1059, %v1058
    %v1072 = vpack.c.b16 %v1061, %v1060
    %v1073 = vpack.c.b16 %v1063, %v1062
    %v1074 = vpack.c.b16 %v1065, %v1064
    %v1075 = vpack.c.b16 %v1067, %v1066
    %1084 = vmatprep.subr.bf16.mxu0 0
    %1085 = vmatpush1.bf16.msra.mxu0 %v1068
    %1086 = vmatprep.subr.bf16.mxu0 0
    %1087 = vmatpush1.bf16.msra.mxu0 %v1069
    %1088 = vmatprep.subr.bf16.mxu0 0
    %1089 = vmatpush1.bf16.msra.mxu0 %v1070
    %1090 = vmatprep.subr.bf16.mxu0 0
    %1091 = vmatpush1.bf16.msra.mxu0 %v1071
    %1092 = vmatprep.subr.bf16.mxu0 0
    %1093 = vmatpush1.bf16.msra.mxu0 %v1072
    %1094 = vmatprep.subr.bf16.mxu0 0
    %1095 = vmatpush1.bf16.msra.mxu0 %v1073
    %1096 = vmatprep.subr.bf16.mxu0 0
    %1097 = vmatpush1.bf16.msra.mxu0 %v1074
    %1098 = vmatprep.subr.bf16.mxu0 0
    %1099 = vmatpush1.bf16.msra.mxu0 %v1075
    %1100 = vmatprep.subr.bf16.mxu0 0
    %1101 = vmatpush1.bf16.msra.mxu0 0
    %1102 = vmatprep.subr.bf16.mxu0 0
    %1103 = vmatpush1.bf16.msra.mxu0 0
    %1104 = vmatprep.subr.bf16.mxu0 0
    %1105 = vmatpush1.bf16.msra.mxu0 0
    %1106 = vmatprep.subr.bf16.mxu0 0
    %1107 = vmatpush1.bf16.msra.mxu0 0
    %1108 = vmatprep.subr.bf16.mxu0 0
    %1109 = vmatpush1.bf16.msra.mxu0 0
    %1110 = vmatprep.subr.bf16.mxu0 0
    %1111 = vmatpush1.bf16.msra.mxu0 0
    %1112 = vmatprep.subr.bf16.mxu0 0
    %1113 = vmatpush1.bf16.msra.mxu0 0
    %1114 = vmatprep.subr.bf16.mxu0 0
    %1115 = vmatpush1.bf16.msra.mxu0 0
    %1116 = vmatprep.mubr.bf16.mxu0 0
    %1117 = vmatmul.mubr.bf16.gmra.mrb[0].mxu0 %v1012
    %v1118 = vpop.f32.mrb[0].mxu0
    %v1119 = vadd.f32 %v1034, %v1118
    %v1120 = vpop.f32.mrb[0].mxu0
    %v1121 = vpop.f32.mrb[0].mxu0
    %v1122 = vadd.f32 %v1034, %v1121
    %v1123 = vpop.f32.mrb[0].mxu0
    %1124 = vdwg.mxu0
    %v1125 = vmax.f32 %v1119, 0.0
    %v1126 = vmax.f32 %v1122, 0.0
    %v1127 = vpack.c.bf16 %v1126, %v1125
    %v1128 = vld [vmem:[#allocation16] sm:$0xf]
    %v1129 = vld [vmem:[#allocation16 + $0x4] sm:$0xf]
    %v1130 = vld [vmem:[#allocation16 + $0x8] sm:$0xf]
    %v1131 = vld [vmem:[#allocation16 + $0xc] sm:$0xf]
    %v1132 = vld [vmem:[#allocation16 + $0x10] sm:$0xf]
    %v1133 = vld [vmem:[#allocation16 + $0x14] sm:$0xf]
    %v1134 = vld [vmem:[#allocation16 + $0x18] sm:$0xf]
    %v1135 = vld [vmem:[#allocation16 + $0x1c] sm:$0xf]
    %v1136 = vld [vmem:[#allocation16 + $0x20] sm:$0xf]
    %v1137 = vld [vmem:[#allocation16 + $0x24] sm:$0xf]
    %v1138 = vld [vmem:[#allocation16 + $0x28] sm:$0xf]
    %v1139 = vld [vmem:[#allocation16 + $0x2c] sm:$0xf]
    %v1140 = vld [vmem:[#allocation16 + $0x30] sm:$0xf]
    %v1141 = vld [vmem:[#allocation16 + $0x34] sm:$0xf]
    %v1142 = vld [vmem:[#allocation16 + $0x38] sm:$0xf]
    %v1143 = vld [vmem:[#allocation16 + $0x3c] sm:$0xf]
    %v1144 = vld [vmem:[#allocation17] sm:$0x1]
    %v1146 = vlaneseq
    %v1147 = vshrl.u32 %v1146, 7
    %v1148 = vsub.s32 0, %v1147
    %v1149 = vrot.slane %v1144, %v1148
    %v1167 = vunpack.c.l.b16 %v1128
    %v1168 = vunpack.c.l.b16 %v1129
    %v1169 = vunpack.c.l.b16 %v1130
    %v1170 = vunpack.c.l.b16 %v1131
    %v1171 = vunpack.c.l.b16 %v1132
    %v1172 = vunpack.c.l.b16 %v1133
    %v1173 = vunpack.c.l.b16 %v1134
    %v1174 = vunpack.c.l.b16 %v1135
    %v1175 = vunpack.c.l.b16 %v1136
    %v1176 = vunpack.c.l.b16 %v1137
    %v1177 = vunpack.c.l.b16 %v1138
    %v1178 = vunpack.c.l.b16 %v1139
    %v1179 = vunpack.c.l.b16 %v1140
    %v1180 = vunpack.c.l.b16 %v1141
    %v1181 = vunpack.c.l.b16 %v1142
    %v1182 = vunpack.c.l.b16 %v1143
    %v1183 = vpack.c.b16 %v1168, %v1167
    %v1184 = vpack.c.b16 %v1170, %v1169
    %v1185 = vpack.c.b16 %v1172, %v1171
    %v1186 = vpack.c.b16 %v1174, %v1173
    %v1187 = vpack.c.b16 %v1176, %v1175
    %v1188 = vpack.c.b16 %v1178, %v1177
    %v1189 = vpack.c.b16 %v1180, %v1179
    %v1190 = vpack.c.b16 %v1182, %v1181
    %1199 = vmatprep.subr.bf16.mxu0 0
    %1200 = vmatpush1.bf16.msra.mxu0 %v1183
    %1201 = vmatprep.subr.bf16.mxu0 0
    %1202 = vmatpush1.bf16.msra.mxu0 %v1184
    %1203 = vmatprep.subr.bf16.mxu0 0
    %1204 = vmatpush1.bf16.msra.mxu0 %v1185
    %1205 = vmatprep.subr.bf16.mxu0 0
    %1206 = vmatpush1.bf16.msra.mxu0 %v1186
    %1207 = vmatprep.subr.bf16.mxu0 0
    %1208 = vmatpush1.bf16.msra.mxu0 %v1187
    %1209 = vmatprep.subr.bf16.mxu0 0
    %1210 = vmatpush1.bf16.msra.mxu0 %v1188
    %1211 = vmatprep.subr.bf16.mxu0 0
    %1212 = vmatpush1.bf16.msra.mxu0 %v1189
    %1213 = vmatprep.subr.bf16.mxu0 0
    %1214 = vmatpush1.bf16.msra.mxu0 %v1190
    %1215 = vmatprep.subr.bf16.mxu0 0
    %1216 = vmatpush1.bf16.msra.mxu0 0
    %1217 = vmatprep.subr.bf16.mxu0 0
    %1218 = vmatpush1.bf16.msra.mxu0 0
    %1219 = vmatprep.subr.bf16.mxu0 0
    %1220 = vmatpush1.bf16.msra.mxu0 0
    %1221 = vmatprep.subr.bf16.mxu0 0
    %1222 = vmatpush1.bf16.msra.mxu0 0
    %1223 = vmatprep.subr.bf16.mxu0 0
    %1224 = vmatpush1.bf16.msra.mxu0 0
    %1225 = vmatprep.subr.bf16.mxu0 0
    %1226 = vmatpush1.bf16.msra.mxu0 0
    %1227 = vmatprep.subr.bf16.mxu0 0
    %1228 = vmatpush1.bf16.msra.mxu0 0
    %1229 = vmatprep.subr.bf16.mxu0 0
    %1230 = vmatpush1.bf16.msra.mxu0 0
    %1231 = vmatprep.mubr.bf16.mxu0 0
    %1232 = vmatmul.mubr.bf16.gmra.mrb[0].mxu0 %v1127
    %v1233 = vpop.f32.mrb[0].mxu0
    %v1234 = vadd.f32 %v1149, %v1233
    %v1235 = vpop.f32.mrb[0].mxu0
    %v1236 = vpop.f32.mrb[0].mxu0
    %v1237 = vadd.f32 %v1149, %v1236
    %v1238 = vpop.f32.mrb[0].mxu0
    %1239 = vdwg.mxu0
    %1240 = vst [vmem:[#allocation19] sm:$0xff] %v1234
    %1241 = vst [vmem:[#allocation19 + $0x8] sm:$0xff] %v1237
    // Predicated region
    $region82: #{tree_regressor_forward.1} parent=1 // pred_check
      _
    $region83: #{tree_regressor_forward.1} parent=1 // pred_check_branch
      %1243 = sbr.rel (0) target = $region85
    $region84: #{tree_regressor_forward.1} parent=1 // pred_region
      %s1245 = ssub.s32 256, 256
      %1246 = vsyncadd [#allocation4], %s1245
      %s1247 = sshll.u32 [#allocation19], 4
      %s1248 = int_to_ptr.vmem [resolvable:$true] %s1247
      %1253 = dma.vmem_to_hbm [thread:$0]  %s1248, 256, %s10, [#allocation4], 128, 128, 8
    $region85: #{tree_regressor_forward.1} parent=1 // pred_fallthru
      _
    // Predicated region
    $region86: #{tree_regressor_forward.1} parent=1 // pred_check
      _
    $region87: #{tree_regressor_forward.1} parent=1 // pred_check_branch
      %1255 = sbr.rel (0) target = $region89
    $region88: #{tree_regressor_forward.1} parent=1 // pred_region
      %1256 = dma.done [#allocation4], 256
    $region89: #{tree_regressor_forward.1} parent=1 // pred_fallthru
      _
    %1257 = vsyncpa [#allocation3], 1
    %1258 = vsyncpa [#allocation6], 1
    %1259 = vsyncpa [#allocation9], 1
    %1260 = vsyncpa [#allocation12], 1
    %1261 = vsyncpa [#allocation15], 1
    %1262 = vsyncpa [#allocation18], 1
    %1263 = vsyncpa [#allocation4], 1

</llo_original>
